<compile_context>
chip_gen: v7x
topology: tpu7x:2x2x1
jax: 0.10.0
libtpu: 0.0.40
codegen_flags: <defaults>
</compile_context>

<pallas_src>
import jax
import jax.numpy as jnp
from jax.experimental import pallas as pl
from jax.experimental.pallas import tpu as pltpu


def _round_up(v, m):
    return ((v + m - 1) // m) * m


def gin_kernel(a_ref, x_ref, eps_ref, w1_ref, b1_ref, w2_ref, b2_ref, o_ref):
    tm = o_ref.shape[0]
    row0 = pl.multiple_of(pl.program_id(0) * tm, tm)

    x_all = x_ref[...]                                # (Np, Fp) f32, resident
    x_tile = x_ref[pl.ds(row0, tm), :]                # (TM, Fp) rows of this tile

    # neighbor aggregation for this row tile: scatter_add(x[col], row) == A @ x
    a_tile = a_ref[...].astype(jnp.float32)           # bf16 storage -> exact f32
    agg = jnp.dot(a_tile, x_all, preferred_element_type=jnp.float32)   # (TM, Fp)

    h = (1.0 + eps_ref[0]) * x_tile + agg             # (TM, Fp)

    # MLP: Linear -> ReLU -> Linear
    h1 = jnp.dot(h, w1_ref[...], preferred_element_type=jnp.float32) + b1_ref[...]
    h1 = jnp.maximum(h1, 0.0)                         # (TM, Hp)
    out = jnp.dot(h1, w2_ref[...], preferred_element_type=jnp.float32) + b2_ref[...]
    o_ref[...] = out.astype(o_ref.dtype)              # (TM, Op)


def gin_conv_pallas(x, edge_index, eps, w1, b1, w2, b2, *, tile_m=128):
    """x: (N, F) f32, edge_index: (2, E) int32, eps: scalar, MLP params."""
    if x.ndim == 1:
        x = x[:, None]
    n, f = x.shape
    h_dim = w1.shape[1]
    o_dim = w2.shape[1]

    row, col = edge_index[0], edge_index[1]
    # remove_self_loops: drop edges where row == col
    valid = (row != col).astype(jnp.float32)
    # dense adjacency with edge multiplicities (glue, not the hot path).
    a = jnp.zeros((n, n), jnp.float32).at[row, col].add(valid)

    # Padded sizes: feature dims to 128 lanes (lane-dense MXU / unmasked vst),
    # node dim to a multiple of the row tile.
    fp = _round_up(f, 128)
    hp = _round_up(h_dim, 128)
    op = _round_up(o_dim, 128)
    tm = min(tile_m, _round_up(n, 16))      # multiple of 16 (bf16 sublane pack)
    np_ = _round_up(n, tm)
    grid = (np_ // tm,)

    # bf16 adjacency: multiplicities exact up to 256; halves HBM traffic.
    a_p = jnp.zeros((np_, np_), jnp.bfloat16).at[:n, :n].set(a.astype(jnp.bfloat16))
    x_p = jnp.zeros((np_, fp), jnp.float32).at[:n, :f].set(x)
    w1_p = jnp.zeros((fp, hp), jnp.float32).at[:f, :h_dim].set(w1)
    b1_p = jnp.zeros((1, hp), jnp.float32).at[0, :h_dim].set(b1)
    w2_p = jnp.zeros((hp, op), jnp.float32).at[:h_dim, :o_dim].set(w2)
    b2_p = jnp.zeros((1, op), jnp.float32).at[0, :o_dim].set(b2)
    eps_arr = jnp.asarray([eps], jnp.float32)

    # Scheduler hint.
    flops = 2 * np_ * np_ * fp + 2 * np_ * fp * hp + 2 * np_ * hp * op
    bytes_accessed = (a_p.size * 2 + x_p.size * 4 + w1_p.size * 4 + b1_p.size * 4
                      + w2_p.size * 4 + b2_p.size * 4 + np_ * op * 4)

    # Explicit VMEM budget with headroom (sized so it also fits v7x's 64 MiB
    # and v5e's smaller default scoped limit).
    vmem_bytes = (
        2 * (tm * np_ * 2 + tm * op * 4)                       # double-buffered A tile + out tile
        + x_p.size * 4 + w1_p.size * 4 + b1_p.size * 4         # resident operands
        + w2_p.size * 4 + b2_p.size * 4
    )
    vmem_limit = int(min(max(2 * vmem_bytes, 16 * 1024 * 1024), 64 * 1024 * 1024))

    out_p = pl.pallas_call(
        gin_kernel,
        out_shape=jax.ShapeDtypeStruct((np_, op), jnp.float32),
        grid=grid,
        in_specs=[
            pl.BlockSpec((tm, np_), lambda i: (i, 0)),                  # A row tile (streamed)
            pl.BlockSpec((np_, fp), lambda i: (0, 0)),                  # x (resident)
            pl.BlockSpec(memory_space=pltpu.MemorySpace.SMEM),          # eps scalar
            pl.BlockSpec((fp, hp), lambda i: (0, 0)),                   # W1 (resident)
            pl.BlockSpec((1, hp), lambda i: (0, 0)),                    # b1 (resident)
            pl.BlockSpec((hp, op), lambda i: (0, 0)),                   # W2 (resident)
            pl.BlockSpec((1, op), lambda i: (0, 0)),                    # b2 (resident)
        ],
        out_specs=pl.BlockSpec((tm, op), lambda i: (i, 0)),
        compiler_params=pltpu.CompilerParams(
            dimension_semantics=("parallel",),     # v7x megacore; no-op on v5e/v6e
            vmem_limit_bytes=vmem_limit,
        ),
        cost_estimate=pl.CostEstimate(
            flops=flops, transcendentals=0, bytes_accessed=bytes_accessed),
    )(a_p, x_p, eps_arr, w1_p, b1_p, w2_p, b2_p)

    return out_p[:n, :o_dim]


def reference(x, edge_index, eps, w1, b1, w2, b2):
    row, col = edge_index[0], edge_index[1]
    valid = row != col
    gathered = jnp.where(valid[:, None], x[col], 0.0)
    agg = jnp.zeros_like(x).at[row].add(gathered)
    h = (1.0 + eps) * x + agg
    h1 = jnp.maximum(h @ w1 + b1, 0.0)
    return h1 @ w2 + b2


if __name__ == "__main__":
    key = jax.random.PRNGKey(0)
    # small graph but large enough to exercise a multi-tile grid (Np=256, TM=128)
    N, F, H, O, E = 200, 32, 64, 32, 600

    k1, k2, k3, k4, k5 = jax.random.split(key, 5)
    x = jax.random.normal(k1, (N, F), jnp.float32)
    row = jax.random.randint(k2, (E,), 0, N, jnp.int32)
    col = jax.random.randint(k3, (E,), 0, N, jnp.int32)
    edge_index = jnp.stack([row, col], axis=0)

    # deterministic MLP parameters (GINConv's `nn` = Linear -> ReLU -> Linear)
    w1 = jax.random.normal(k4, (F, H), jnp.float32) * (1.0 / jnp.sqrt(F))
    b1 = jnp.zeros((H,), jnp.float32)
    w2 = jax.random.normal(k5, (H, O), jnp.float32) * (1.0 / jnp.sqrt(H))
    b2 = jnp.zeros((O,), jnp.float32)
    eps = 0.0   # GINConv default (train_eps=False)

    out = gin_conv_pallas(x, edge_index, eps, w1, b1, w2, b2)
    jax.block_until_ready(out)

    ref = reference(x, edge_index, eps, w1, b1, w2, b2)
    assert out.shape == (N, O)
    assert jnp.allclose(out, ref, atol=1e-3, rtol=1e-3), "mismatch vs reference"
    print("KERNEL_OK")
</pallas_src>

<mosaic_0001>
module attributes {stable_mosaic.version = 11 : i64} {
  func.func @gin_kernel(%arg0: i32, %arg1: memref<128x256xbf16, #tpu.memory_space<vmem>>, %arg2: memref<256x128xf32, #tpu.memory_space<vmem>>, %arg3: memref<1xf32, #tpu.memory_space<smem>>, %arg4: memref<128x128xf32, #tpu.memory_space<vmem>>, %arg5: memref<1x128xf32, #tpu.memory_space<vmem>>, %arg6: memref<128x128xf32, #tpu.memory_space<vmem>>, %arg7: memref<1x128xf32, #tpu.memory_space<vmem>>, %arg8: memref<128x128xf32, #tpu.memory_space<vmem>>) attributes {dimension_semantics = [#tpu.dimension_semantics<parallel>], iteration_bounds = array<i64: 2>, scalar_prefetch = 0 : i64, scratch_operands = 0 : i64, tpu.core_type = #tpu.core_type<tc>, window_params = [{transform_indices = @transform_0, window_bounds = array<i64: 128, 256>}, {pipeline_mode = #tpu.pipeline_mode<synchronous>, transform_indices = @transform_1, window_bounds = array<i64: 256, 128>}, {transform_indices = @transform_2, window_bounds = array<i64: 1>}, {pipeline_mode = #tpu.pipeline_mode<synchronous>, transform_indices = @transform_3, window_bounds = array<i64: 128, 128>}, {pipeline_mode = #tpu.pipeline_mode<synchronous>, transform_indices = @transform_4, window_bounds = array<i64: 1, 128>}, {pipeline_mode = #tpu.pipeline_mode<synchronous>, transform_indices = @transform_5, window_bounds = array<i64: 128, 128>}, {pipeline_mode = #tpu.pipeline_mode<synchronous>, transform_indices = @transform_6, window_bounds = array<i64: 1, 128>}, {transform_indices = @transform_7, window_bounds = array<i64: 128, 128>}]} {
    %c128_i32 = arith.constant 128 : i32
    %0 = arith.muli %arg0, %c128_i32 : i32
    %1 = tpu.assume_multiple %0, 128 : i32
    %c0 = arith.constant 0 : index
    %c0_0 = arith.constant 0 : index
    %2 = vector.load %arg2[%c0, %c0_0] : memref<256x128xf32, #tpu.memory_space<vmem>>, vector<256x128xf32>
    %3 = arith.index_cast %1 : i32 to index
    %c0_1 = arith.constant 0 : index
    %4 = vector.load %arg2[%3, %c0_1] : memref<256x128xf32, #tpu.memory_space<vmem>>, vector<128x128xf32>
    %c0_2 = arith.constant 0 : index
    %c0_3 = arith.constant 0 : index
    %5 = vector.load %arg1[%c0_2, %c0_3] : memref<128x256xbf16, #tpu.memory_space<vmem>>, vector<128x256xbf16>
    %6 = arith.extf %5 : vector<128x256xbf16> to vector<128x256xf32>
    %cst = arith.constant dense<0.000000e+00> : vector<128x128xf32>
    %7 = tpu.matmul %6, %2, %cst {dimension_numbers = #tpu.dot_dimension_numbers<[1], [0], [0], [1], [0, 0, 1, 1], [], []>} : vector<128x256xf32>, vector<256x128xf32>, vector<128x128xf32> -> vector<128x128xf32>
    %c0_4 = arith.constant 0 : index
    %8 = memref.load %arg3[%c0_4] : memref<1xf32, #tpu.memory_space<smem>>
    %cst_5 = arith.constant 1.000000e+00 : f32
    %9 = arith.addf %cst_5, %8 : f32
    %10 = vector.broadcast %9 : f32 to vector<128x128xf32>
    %11 = arith.mulf %10, %4 : vector<128x128xf32>
    %12 = arith.addf %11, %7 : vector<128x128xf32>
    %c0_6 = arith.constant 0 : index
    %c0_7 = arith.constant 0 : index
    %13 = vector.load %arg4[%c0_6, %c0_7] : memref<128x128xf32, #tpu.memory_space<vmem>>, vector<128x128xf32>
    %cst_8 = arith.constant dense<0.000000e+00> : vector<128x128xf32>
    %14 = tpu.matmul %12, %13, %cst_8 {dimension_numbers = #tpu.dot_dimension_numbers<[1], [0], [0], [1], [0, 0, 1, 1], [], []>} : vector<128x128xf32>, vector<128x128xf32>, vector<128x128xf32> -> vector<128x128xf32>
    %c0_9 = arith.constant 0 : index
    %c0_10 = arith.constant 0 : index
    %15 = vector.load %arg5[%c0_9, %c0_10] : memref<1x128xf32, #tpu.memory_space<vmem>>, vector<1x128xf32>
    %16 = vector.broadcast %15 : vector<1x128xf32> to vector<128x128xf32>
    %17 = arith.addf %14, %16 : vector<128x128xf32>
    %cst_11 = arith.constant 0.000000e+00 : f32
    %18 = vector.broadcast %cst_11 : f32 to vector<128x128xf32>
    %19 = arith.maximumf %17, %18 : vector<128x128xf32>
    %c0_12 = arith.constant 0 : index
    %c0_13 = arith.constant 0 : index
    %20 = vector.load %arg6[%c0_12, %c0_13] : memref<128x128xf32, #tpu.memory_space<vmem>>, vector<128x128xf32>
    %cst_14 = arith.constant dense<0.000000e+00> : vector<128x128xf32>
    %21 = tpu.matmul %19, %20, %cst_14 {dimension_numbers = #tpu.dot_dimension_numbers<[1], [0], [0], [1], [0, 0, 1, 1], [], []>} : vector<128x128xf32>, vector<128x128xf32>, vector<128x128xf32> -> vector<128x128xf32>
    %c0_15 = arith.constant 0 : index
    %c0_16 = arith.constant 0 : index
    %22 = vector.load %arg7[%c0_15, %c0_16] : memref<1x128xf32, #tpu.memory_space<vmem>>, vector<1x128xf32>
    %23 = vector.broadcast %22 : vector<1x128xf32> to vector<128x128xf32>
    %24 = arith.addf %21, %23 : vector<128x128xf32>
    %c0_17 = arith.constant 0 : index
    %c0_18 = arith.constant 0 : index
    %25 = vector.load %arg8[%c0_17, %c0_18] : memref<128x128xf32, #tpu.memory_space<vmem>>, vector<128x128xf32>
    tpu.vector_store %arg8[%c0_17, %c0_18], %24 {strides = array<i32>} : memref<128x128xf32, #tpu.memory_space<vmem>>, vector<128x128xf32>,
    return
  }
  func.func @transform_0(%arg0: i32) -> (i32, i32) {
    %c0_i32 = arith.constant 0 : i32
    %c0_i32_0 = arith.constant 0 : i32
    return %arg0, %c0_i32 : i32, i32
  }
  func.func @transform_1(%arg0: i32) -> (i32, i32) {
    %c0_i32 = arith.constant 0 : i32
    %c0_i32_0 = arith.constant 0 : i32
    %c0_i32_1 = arith.constant 0 : i32
    return %c0_i32, %c0_i32_0 : i32, i32
  }
  func.func @transform_2(%arg0: i32) -> i32 {
    %c0_i32 = arith.constant 0 : i32
    %c0_i32_0 = arith.constant 0 : i32
    return %c0_i32 : i32
  }
  func.func @transform_3(%arg0: i32) -> (i32, i32) {
    %c0_i32 = arith.constant 0 : i32
    %c0_i32_0 = arith.constant 0 : i32
    %c0_i32_1 = arith.constant 0 : i32
    return %c0_i32, %c0_i32_0 : i32, i32
  }
  func.func @transform_4(%arg0: i32) -> (i32, i32) {
    %c0_i32 = arith.constant 0 : i32
    %c0_i32_0 = arith.constant 0 : i32
    %c0_i32_1 = arith.constant 0 : i32
    return %c0_i32, %c0_i32_0 : i32, i32
  }
  func.func @transform_5(%arg0: i32) -> (i32, i32) {
    %c0_i32 = arith.constant 0 : i32
    %c0_i32_0 = arith.constant 0 : i32
    %c0_i32_1 = arith.constant 0 : i32
    return %c0_i32, %c0_i32_0 : i32, i32
  }
  func.func @transform_6(%arg0: i32) -> (i32, i32) {
    %c0_i32 = arith.constant 0 : i32
    %c0_i32_0 = arith.constant 0 : i32
    %c0_i32_1 = arith.constant 0 : i32
    return %c0_i32, %c0_i32_0 : i32, i32
  }
  func.func @transform_7(%arg0: i32) -> (i32, i32) {
    %c0_i32 = arith.constant 0 : i32
    %c0_i32_0 = arith.constant 0 : i32
    return %arg0, %c0_i32 : i32, i32
  }
}

</mosaic_0001>

<llo_original>
// kernel: tpu_custom_call.1
$region0: #{tpu_custom_call.1}
  #allocation0 [shape = 'u32[]', space=smem, size = 0x4, offset = 0x4, fixed_abs, tag = 'smem constant byte address 0x4 - core index']
  #allocation1 [shape = 'u32[144,128]{1,0:T(1,128)}', space=vmem, size = 0x12000, scoped, tag = 'internal scratch']
  #allocation2 [shape = 'f32[1]{0:T(128)S(6)}', space=smem, size = 0x200, scoped, tag = 'scoped memory for tpu_custom_call.1']
  %s0 = inlined_call_operand.hbm [shape: bf16[256,256], index: 0, kind: input, shape index: {}]
  %s1 = inlined_call_operand.hbm [shape: f32[256,128], index: 1, kind: input, shape index: {}]
  %s2 = inlined_call_operand.<no memory space> [shape: f32[1], index: 2, kind: input, shape index: {}]
  %s3 = inlined_call_operand.hbm [shape: f32[128,128], index: 3, kind: input, shape index: {}]
  %s4 = inlined_call_operand.vmem [shape: f32[1,128], index: 4, kind: input, shape index: {}]
  %s5 = inlined_call_operand.hbm [shape: f32[128,128], index: 5, kind: input, shape index: {}]
  %s6 = inlined_call_operand.vmem [shape: f32[1,128], index: 6, kind: input, shape index: {}]
  %s7 = inlined_call_operand.hbm [shape: f32[256,128], index: 7, kind: output, shape index: {}]
  %s8 = sld [smem:[#allocation0]]
  $region77: #{tpu_custom_call.1} parent=0
    _
  %s10 = ssub.s32 1, %s8
  %s11 = scalar_select 0, %s10, %s8
  %12 = sst [smem:[#allocation2]] %s2
  $region1: #{tpu_custom_call.1} parent=0
    #allocation3 [shape = 'u8[131072]{0}', space=vmem, size = 0x20000, scoped, tag = 'input window, operand 0']
    #allocation4 [shape = 's32[2]{0}', space=sflag, size = 0x8, scoped, tag = 'scoped memory for tpu_custom_call.1']
    #allocation5 [shape = 's32[2]{0}', space=sflag, size = 0x8, scoped, tag = 'scoped memory for tpu_custom_call.1']
    #allocation6 [shape = 'u8[131072]{0}', space=vmem, size = 0x20000, scoped, tag = 'input window, operand 1, single buffered']
    #allocation7 [shape = 's32[1]{0}', space=sflag, size = 0x4, scoped, tag = 'scoped memory for tpu_custom_call.1']
    #allocation8 [shape = 'u8[65536]{0}', space=vmem, size = 0x10000, scoped, tag = 'input window, operand 3, single buffered']
    #allocation9 [shape = 'u8[65536]{0}', space=vmem, size = 0x10000, scoped, tag = 'input window, operand 5, single buffered']
    #allocation10 [shape = 's32[1]{0}', space=sflag, size = 0x4, scoped, tag = 'scoped memory for tpu_custom_call.1']
    #allocation11 [shape = 'u8[131072]{0}', space=vmem, size = 0x20000, scoped, tag = 'output window, operand 0']
    %13 = vsyncpa [#allocation4], 0
    %s14 = scalar_lea.sflag [#allocation4], 1
    %15 = vsyncpa %s14, 0
    %16 = vsyncpa [#allocation7], 0
    %17 = vsyncpa [#allocation10], 0
    %18 = vsyncpa [#allocation5], 0
    %s19 = scalar_lea.sflag [#allocation5], 1
    %20 = vsyncpa %s19, 0
    loop: start=0, step=1, limit=4
    $region2: #{tpu_custom_call.1} parent=1 // loop_pre_header
      _
    $region3: #{tpu_custom_call.1} parent=1 // loop_header
      %s22 = sphi 0, %s26
      %p23 = scmp.ge.s32.totalorder %s22, 4
      %s32 = sphi 0, %s34
      %s35 = sphi 0, %s32
      %s36 = sphi 0, %s35
      %s52 = sphi 0, %s36
      %s56 = sphi 0, %s56
      %s58 = sphi 0, %s56
      %s59 = sphi 0, %s58
      %s73 = sphi 0, %s59
      %s77 = sphi 0, %s77
      %s79 = sphi 0, %s77
      %s80 = sphi 0, %s79
      %s94 = sphi 0, %s80
      %s98 = sphi 0, %s98
      %s100 = sphi 0, %s98
      %s101 = sphi 0, %s100
      %s115 = sphi 0, %s101
      %s119 = sphi 0, %s119
      %s121 = sphi 0, %s119
      %s122 = sphi 0, %s121
      %s136 = sphi 0, %s122
      %s140 = sphi 0, %s140
      %s142 = sphi 0, %s140
      %s143 = sphi 0, %s142
      %s157 = sphi 0, %s143
      %s161 = sphi 0, %s161
      %s163 = sphi 0, %s161
      %s164 = sphi 0, %s163
      %s178 = sphi 0, %s164
      %s184 = sphi 0, %s186
      %s187 = sphi 0, %s184
      %s188 = sphi 0, %s187
      %s204 = sphi 0, %s188
    $region4: #{tpu_custom_call.1} parent=1 // loop_header_branch
      %25 = sbr.rel (%p23) target = $region8
    $region5: #{tpu_custom_call.1} parent=1 // loop_body
      %s27 = ssub.s32 %s22, 1
      %s28 = ssub.s32 %s22, 2
      %s29 = sadd.s32 %s22, 1
      %s30 = ssub.s32 %s22, %s29
      %p31 = scmp.eq.s32.totalorder %s30, 0
      %s33 = sadd.s32 %s32, 1
      %s34 = scalar_select %p31, %s32, %s33
      %p37 = pneg %p31
      %p38 = scmp.eq.s32.totalorder %s22, 1
      %p39 = por %p37, %p38
      %p40 = scmp.ne.s32.totalorder %s32, %s35
      %p41 = scmp.eq.s32.totalorder %s22, 0
      %p42 = por %p40, %p41
      %p43 = scmp.ne.s32.totalorder %s32, %s35
      %p44 = scmp.eq.s32.totalorder %s27, 1
      %p45 = por %p43, %p44
      %p46 = scmp.ne.s32.totalorder %s35, %s36
      %p47 = scmp.eq.s32.totalorder %s27, 0
      %p48 = por %p46, %p47
      %p49 = scmp.ne.s32.totalorder %s35, %s36
      %p50 = scmp.eq.s32.totalorder %s28, 1
      %p51 = por %p49, %p50
      %p53 = scmp.ne.s32.totalorder %s36, %s52
      %p54 = scmp.eq.s32.totalorder %s28, 0
      %p55 = por %p53, %p54
      %s57 = sadd.s32 %s56, 1
      %p60 = scmp.eq.s32.totalorder %s22, 1
      %p61 = scmp.ne.s32.totalorder %s56, %s58
      %p62 = scmp.eq.s32.totalorder %s22, 0
      %p63 = por %p61, %p62
      %p64 = scmp.ne.s32.totalorder %s56, %s58
      %p65 = scmp.eq.s32.totalorder %s27, 1
      %p66 = por %p64, %p65
      %p67 = scmp.ne.s32.totalorder %s58, %s59
      %p68 = scmp.eq.s32.totalorder %s27, 0
      %p69 = por %p67, %p68
      %p70 = scmp.ne.s32.totalorder %s58, %s59
      %p71 = scmp.eq.s32.totalorder %s28, 1
      %p72 = por %p70, %p71
      %p74 = scmp.ne.s32.totalorder %s59, %s73
      %p75 = scmp.eq.s32.totalorder %s28, 0
      %p76 = por %p74, %p75
      %s78 = sadd.s32 %s77, 1
      %p81 = scmp.eq.s32.totalorder %s22, 1
      %p82 = scmp.ne.s32.totalorder %s77, %s79
      %p83 = scmp.eq.s32.totalorder %s22, 0
      %p84 = por %p82, %p83
      %p85 = scmp.ne.s32.totalorder %s77, %s79
      %p86 = scmp.eq.s32.totalorder %s27, 1
      %p87 = por %p85, %p86
      %p88 = scmp.ne.s32.totalorder %s79, %s80
      %p89 = scmp.eq.s32.totalorder %s27, 0
      %p90 = por %p88, %p89
      %p91 = scmp.ne.s32.totalorder %s79, %s80
      %p92 = scmp.eq.s32.totalorder %s28, 1
      %p93 = por %p91, %p92
      %p95 = scmp.ne.s32.totalorder %s80, %s94
      %p96 = scmp.eq.s32.totalorder %s28, 0
      %p97 = por %p95, %p96
      %s99 = sadd.s32 %s98, 1
      %p102 = scmp.eq.s32.totalorder %s22, 1
      %p103 = scmp.ne.s32.totalorder %s98, %s100
      %p104 = scmp.eq.s32.totalorder %s22, 0
      %p105 = por %p103, %p104
      %p106 = scmp.ne.s32.totalorder %s98, %s100
      %p107 = scmp.eq.s32.totalorder %s27, 1
      %p108 = por %p106, %p107
      %p109 = scmp.ne.s32.totalorder %s100, %s101
      %p110 = scmp.eq.s32.totalorder %s27, 0
      %p111 = por %p109, %p110
      %p112 = scmp.ne.s32.totalorder %s100, %s101
      %p113 = scmp.eq.s32.totalorder %s28, 1
      %p114 = por %p112, %p113
      %p116 = scmp.ne.s32.totalorder %s101, %s115
      %p117 = scmp.eq.s32.totalorder %s28, 0
      %p118 = por %p116, %p117
      %s120 = sadd.s32 %s119, 1
      %p123 = scmp.eq.s32.totalorder %s22, 1
      %p124 = scmp.ne.s32.totalorder %s119, %s121
      %p125 = scmp.eq.s32.totalorder %s22, 0
      %p126 = por %p124, %p125
      %p127 = scmp.ne.s32.totalorder %s119, %s121
      %p128 = scmp.eq.s32.totalorder %s27, 1
      %p129 = por %p127, %p128
      %p130 = scmp.ne.s32.totalorder %s121, %s122
      %p131 = scmp.eq.s32.totalorder %s27, 0
      %p132 = por %p130, %p131
      %p133 = scmp.ne.s32.totalorder %s121, %s122
      %p134 = scmp.eq.s32.totalorder %s28, 1
      %p135 = por %p133, %p134
      %p137 = scmp.ne.s32.totalorder %s122, %s136
      %p138 = scmp.eq.s32.totalorder %s28, 0
      %p139 = por %p137, %p138
      %s141 = sadd.s32 %s140, 1
      %p144 = scmp.eq.s32.totalorder %s22, 1
      %p145 = scmp.ne.s32.totalorder %s140, %s142
      %p146 = scmp.eq.s32.totalorder %s22, 0
      %p147 = por %p145, %p146
      %p148 = scmp.ne.s32.totalorder %s140, %s142
      %p149 = scmp.eq.s32.totalorder %s27, 1
      %p150 = por %p148, %p149
      %p151 = scmp.ne.s32.totalorder %s142, %s143
      %p152 = scmp.eq.s32.totalorder %s27, 0
      %p153 = por %p151, %p152
      %p154 = scmp.ne.s32.totalorder %s142, %s143
      %p155 = scmp.eq.s32.totalorder %s28, 1
      %p156 = por %p154, %p155
      %p158 = scmp.ne.s32.totalorder %s143, %s157
      %p159 = scmp.eq.s32.totalorder %s28, 0
      %p160 = por %p158, %p159
      %s162 = sadd.s32 %s161, 1
      %p165 = scmp.eq.s32.totalorder %s22, 1
      %p166 = scmp.ne.s32.totalorder %s161, %s163
      %p167 = scmp.eq.s32.totalorder %s22, 0
      %p168 = por %p166, %p167
      %p169 = scmp.ne.s32.totalorder %s161, %s163
      %p170 = scmp.eq.s32.totalorder %s27, 1
      %p171 = por %p169, %p170
      %p172 = scmp.ne.s32.totalorder %s163, %s164
      %p173 = scmp.eq.s32.totalorder %s27, 0
      %p174 = por %p172, %p173
      %p175 = scmp.ne.s32.totalorder %s163, %s164
      %p176 = scmp.eq.s32.totalorder %s28, 1
      %p177 = por %p175, %p176
      %p179 = scmp.ne.s32.totalorder %s164, %s178
      %p180 = scmp.eq.s32.totalorder %s28, 0
      %p181 = por %p179, %p180
      %s182 = ssub.s32 %s22, %s29
      %p183 = scmp.eq.s32.totalorder %s182, 0
      %s185 = sadd.s32 %s184, 1
      %s186 = scalar_select %p183, %s184, %s185
      %p189 = pneg %p183
      %p190 = scmp.eq.s32.totalorder %s22, 1
      %p191 = por %p189, %p190
      %p192 = scmp.ne.s32.totalorder %s184, %s187
      %p193 = scmp.eq.s32.totalorder %s22, 0
      %p194 = por %p192, %p193
      %p195 = scmp.ne.s32.totalorder %s184, %s187
      %p196 = scmp.eq.s32.totalorder %s27, 1
      %p197 = por %p195, %p196
      %p198 = scmp.ne.s32.totalorder %s187, %s188
      %p199 = scmp.eq.s32.totalorder %s27, 0
      %p200 = por %p198, %p199
      %p201 = scmp.ne.s32.totalorder %s187, %s188
      %p202 = scmp.eq.s32.totalorder %s28, 1
      %p203 = por %p201, %p202
      %p205 = scmp.ne.s32.totalorder %s188, %s204
      %p206 = scmp.eq.s32.totalorder %s28, 0
      %p207 = por %p205, %p206
      %p208 = scmp.le.s32.totalorder 1, %s22
      %p209 = scmp.lt.s32.totalorder %s22, 3
      %p210 = pnand %p208, %p209
      %p211 = pneg %p210
      // Predicated region
      $region9: #{tpu_custom_call.1} parent=5 // pred_check
        _
      $region10: #{tpu_custom_call.1} parent=5 // pred_check_branch
        %213 = sbr.rel (%p210) target = $region12
      $region11: #{tpu_custom_call.1} parent=5 // pred_region
        %s214 = ssub.s32 %s22, 1
        // Predicated region
        $region13: #{tpu_custom_call.1} parent=11 // pred_check
          %p215 = pneg %p69
        $region14: #{tpu_custom_call.1} parent=11 // pred_check_branch
          %217 = sbr.rel (%p215) target = $region16
        $region15: #{tpu_custom_call.1} parent=11 // pred_region
          %s219 = ssub.s32 4096, 4096
          %220 = vsyncadd [#allocation7], %s219
          %s221 = sshll.u32 [#allocation6], 4
          %s222 = int_to_ptr.vmem [resolvable:$true] %s221
          %227 = dma.hbm_to_vmem [thread:$0]  %s1, 4096, %s222, [#allocation7], 128, 128, 8
        $region16: #{tpu_custom_call.1} parent=11 // pred_fallthru
          _
        // Predicated region
        $region17: #{tpu_custom_call.1} parent=11 // pred_check
          %p228 = pneg %p90
        $region18: #{tpu_custom_call.1} parent=11 // pred_check_branch
          %230 = sbr.rel (%p228) target = $region20
        $region19: #{tpu_custom_call.1} parent=11 // pred_region
          _
        $region20: #{tpu_custom_call.1} parent=11 // pred_fallthru
          _
        // Predicated region
        $region21: #{tpu_custom_call.1} parent=11 // pred_check
          %p231 = pneg %p111
        $region22: #{tpu_custom_call.1} parent=11 // pred_check_branch
          %233 = sbr.rel (%p231) target = $region24
        $region23: #{tpu_custom_call.1} parent=11 // pred_region
          %s235 = ssub.s32 2048, 2048
          %236 = vsyncadd [#allocation7], %s235
          %s237 = sshll.u32 [#allocation8], 4
          %s238 = int_to_ptr.vmem [resolvable:$true] %s237
          %243 = dma.hbm_to_vmem [thread:$0]  %s3, 2048, %s238, [#allocation7], 128, 128, 8
        $region24: #{tpu_custom_call.1} parent=11 // pred_fallthru
          _
        // Predicated region
        $region25: #{tpu_custom_call.1} parent=11 // pred_check
          %p244 = pneg %p132
        $region26: #{tpu_custom_call.1} parent=11 // pred_check_branch
          %246 = sbr.rel (%p244) target = $region28
        $region27: #{tpu_custom_call.1} parent=11 // pred_region
          _
        $region28: #{tpu_custom_call.1} parent=11 // pred_fallthru
          _
        // Predicated region
        $region29: #{tpu_custom_call.1} parent=11 // pred_check
          %p247 = pneg %p153
        $region30: #{tpu_custom_call.1} parent=11 // pred_check_branch
          %249 = sbr.rel (%p247) target = $region32
        $region31: #{tpu_custom_call.1} parent=11 // pred_region
          %s251 = ssub.s32 2048, 2048
          %252 = vsyncadd [#allocation10], %s251
          %s253 = sshll.u32 [#allocation9], 4
          %s254 = int_to_ptr.vmem [resolvable:$true] %s253
          %259 = dma.hbm_to_vmem [thread:$0]  %s5, 2048, %s254, [#allocation10], 128, 128, 8
        $region32: #{tpu_custom_call.1} parent=11 // pred_fallthru
          _
        // Predicated region
        $region33: #{tpu_custom_call.1} parent=11 // pred_check
          %p260 = pneg %p174
        $region34: #{tpu_custom_call.1} parent=11 // pred_check_branch
          %262 = sbr.rel (%p260) target = $region36
        $region35: #{tpu_custom_call.1} parent=11 // pred_region
          _
        $region36: #{tpu_custom_call.1} parent=11 // pred_fallthru
          _
      $region12: #{tpu_custom_call.1} parent=5 // pred_fallthru
        _
      %p263 = scmp.lt.s32.totalorder %s22, 2
      // Predicated region
      $region37: #{tpu_custom_call.1} parent=5 // pred_check
        %p264 = pneg %p263
      $region38: #{tpu_custom_call.1} parent=5 // pred_check_branch
        %266 = sbr.rel (%p264) target = $region40
      $region39: #{tpu_custom_call.1} parent=5 // pred_region
        // Predicated region
        $region41: #{tpu_custom_call.1} parent=39 // pred_check
          %p267 = pneg %p42
        $region42: #{tpu_custom_call.1} parent=39 // pred_check_branch
          %269 = sbr.rel (%p267) target = $region44
        $region43: #{tpu_custom_call.1} parent=39 // pred_region
          %s270 = sand.u32 %s32, 1
          %s271 = scalar_lea.sflag [#allocation4], %s270
          %s272 = sand.u32 %s32, 1
          %s273 = smul.addr %s272, 128
          %s274 = scalar_lea.vmem [#allocation3], %s273
          %s275 = smul.u32 16, %s22
          %s277 = ssub.s32 2048, 2048
          %278 = vsyncadd %s271, %s277
          %s279 = smul.addr %s275, 2
          %s280 = smul.addr %s279, 64
          %s281 = scalar_lea.hbm %s0, %s280
          %s282 = sshll.u32 %s274, 4
          %s283 = int_to_ptr.vmem [resolvable:$true] %s282
          %288 = dma.hbm_to_vmem [thread:$0]  %s281, 2048, %s283, %s271, 128, 128, 8
        $region44: #{tpu_custom_call.1} parent=39 // pred_fallthru
          _
      $region40: #{tpu_custom_call.1} parent=5 // pred_fallthru
        _
      %p289 = scmp.le.s32.totalorder 1, %s22
      %p290 = scmp.lt.s32.totalorder %s22, 3
      %p291 = pnand %p289, %p290
      %p292 = pneg %p291
      // Predicated region
      $region45: #{tpu_custom_call.1} parent=5 // pred_check
        _
      $region46: #{tpu_custom_call.1} parent=5 // pred_check_branch
        %294 = sbr.rel (%p291) target = $region48
      $region47: #{tpu_custom_call.1} parent=5 // pred_region
        %s295 = ssub.s32 %s22, 1
        %s296 = sand.u32 %s35, 1
        %s297 = scalar_lea.sflag [#allocation4], %s296
        %s298 = sand.u32 %s35, 1
        %s299 = smul.addr %s298, 128
        %s300 = scalar_lea.vmem [#allocation3], %s299
        // Predicated region
        $region49: #{tpu_custom_call.1} parent=47 // pred_check
          %p301 = pneg %p48
        $region50: #{tpu_custom_call.1} parent=47 // pred_check_branch
          %303 = sbr.rel (%p301) target = $region52
        $region51: #{tpu_custom_call.1} parent=47 // pred_region
          %304 = dma.done %s297, 2048
        $region52: #{tpu_custom_call.1} parent=47 // pred_fallthru
          _
        // Predicated region
        $region53: #{tpu_custom_call.1} parent=47 // pred_check
          %p305 = pneg %p69
        $region54: #{tpu_custom_call.1} parent=47 // pred_check_branch
          %307 = sbr.rel (%p305) target = $region56
        $region55: #{tpu_custom_call.1} parent=47 // pred_region
          %308 = dma.done [#allocation7], 4096
        $region56: #{tpu_custom_call.1} parent=47 // pred_fallthru
          _
        // Predicated region
        $region57: #{tpu_custom_call.1} parent=47 // pred_check
          %p309 = pneg %p111
        $region58: #{tpu_custom_call.1} parent=47 // pred_check_branch
          %311 = sbr.rel (%p309) target = $region60
        $region59: #{tpu_custom_call.1} parent=47 // pred_region
          %312 = dma.done [#allocation7], 2048
        $region60: #{tpu_custom_call.1} parent=47 // pred_fallthru
          _
        // Predicated region
        $region61: #{tpu_custom_call.1} parent=47 // pred_check
          %p313 = pneg %p153
        $region62: #{tpu_custom_call.1} parent=47 // pred_check_branch
          %315 = sbr.rel (%p313) target = $region64
        $region63: #{tpu_custom_call.1} parent=47 // pred_region
          %316 = dma.done [#allocation10], 2048
        $region64: #{tpu_custom_call.1} parent=47 // pred_fallthru
          _
        %s317 = sand.u32 %s35, 1
        %s318 = scalar_lea.sflag [#allocation4], %s317
        %s319 = sand.u32 %s35, 1
        %s320 = smul.addr %s319, 128
        %s321 = scalar_lea.vmem [#allocation3], %s320
        %p322 = pneg %p48
        %p323 = pneg %p45
        %p324 = pneg %p69
        %p325 = pneg %p66
        %p326 = pneg %p90
        %p327 = pneg %p87
        %p328 = pneg %p111
        %p329 = pneg %p108
        %p330 = pneg %p132
        %p331 = pneg %p129
        %p332 = pneg %p153
        %p333 = pneg %p150
        %p334 = pneg %p174
        %p335 = pneg %p171
        %p336 = pneg %p200
        %p337 = pneg %p197
        %s338 = sand.u32 %s187, 1
        %s339 = scalar_lea.sflag [#allocation5], %s338
        %s340 = sand.u32 %s187, 1
        %s341 = smul.addr %s340, 128
        %s342 = scalar_lea.vmem [#allocation11], %s341
        %s343 = smul.u32 16, %s27
        %s344 = smul.u32 16, %s27
        %s345 = smul.u32 %s27, 128
        %v346 = vld [vmem:[#allocation6] sm:$0xff]
        %v347 = vld [vmem:[#allocation6 + $0x8] sm:$0xff]
        %v348 = vld [vmem:[#allocation6 + $0x10] sm:$0xff]
        %v349 = vld [vmem:[#allocation6 + $0x18] sm:$0xff]
        %v350 = vld [vmem:[#allocation6 + $0x20] sm:$0xff]
        %v351 = vld [vmem:[#allocation6 + $0x28] sm:$0xff]
        %v352 = vld [vmem:[#allocation6 + $0x30] sm:$0xff]
        %v353 = vld [vmem:[#allocation6 + $0x38] sm:$0xff]
        %v354 = vld [vmem:[#allocation6 + $0x40] sm:$0xff]
        %v355 = vld [vmem:[#allocation6 + $0x48] sm:$0xff]
        %v356 = vld [vmem:[#allocation6 + $0x50] sm:$0xff]
        %v357 = vld [vmem:[#allocation6 + $0x58] sm:$0xff]
        %v358 = vld [vmem:[#allocation6 + $0x60] sm:$0xff]
        %v359 = vld [vmem:[#allocation6 + $0x68] sm:$0xff]
        %v360 = vld [vmem:[#allocation6 + $0x70] sm:$0xff]
        %v361 = vld [vmem:[#allocation6 + $0x78] sm:$0xff]
        %v362 = vld [vmem:[#allocation6 + $0x80] sm:$0xff]
        %v363 = vld [vmem:[#allocation6 + $0x88] sm:$0xff]
        %v364 = vld [vmem:[#allocation6 + $0x90] sm:$0xff]
        %v365 = vld [vmem:[#allocation6 + $0x98] sm:$0xff]
        %v366 = vld [vmem:[#allocation6 + $0xa0] sm:$0xff]
        %v367 = vld [vmem:[#allocation6 + $0xa8] sm:$0xff]
        %v368 = vld [vmem:[#allocation6 + $0xb0] sm:$0xff]
        %v369 = vld [vmem:[#allocation6 + $0xb8] sm:$0xff]
        %v370 = vld [vmem:[#allocation6 + $0xc0] sm:$0xff]
        %v371 = vld [vmem:[#allocation6 + $0xc8] sm:$0xff]
        %v372 = vld [vmem:[#allocation6 + $0xd0] sm:$0xff]
        %v373 = vld [vmem:[#allocation6 + $0xd8] sm:$0xff]
        %v374 = vld [vmem:[#allocation6 + $0xe0] sm:$0xff]
        %v375 = vld [vmem:[#allocation6 + $0xe8] sm:$0xff]
        %v376 = vld [vmem:[#allocation6 + $0xf0] sm:$0xff]
        %v377 = vld [vmem:[#allocation6 + $0xf8] sm:$0xff]
        %s378 = scalar_lea.vmem [#allocation6], %s345
        %v379 = vld [vmem:[%s378] sm:$0xff]
        %v380 = vld [vmem:[%s378 + $0x8] sm:$0xff]
        %v381 = vld [vmem:[%s378 + $0x10] sm:$0xff]
        %v382 = vld [vmem:[%s378 + $0x18] sm:$0xff]
        %v383 = vld [vmem:[%s378 + $0x20] sm:$0xff]
        %v384 = vld [vmem:[%s378 + $0x28] sm:$0xff]
        %v385 = vld [vmem:[%s378 + $0x30] sm:$0xff]
        %v386 = vld [vmem:[%s378 + $0x38] sm:$0xff]
        %v387 = vld [vmem:[%s378 + $0x40] sm:$0xff]
        %v388 = vld [vmem:[%s378 + $0x48] sm:$0xff]
        %v389 = vld [vmem:[%s378 + $0x50] sm:$0xff]
        %v390 = vld [vmem:[%s378 + $0x58] sm:$0xff]
        %v391 = vld [vmem:[%s378 + $0x60] sm:$0xff]
        %v392 = vld [vmem:[%s378 + $0x68] sm:$0xff]
        %v393 = vld [vmem:[%s378 + $0x70] sm:$0xff]
        %v394 = vld [vmem:[%s378 + $0x78] sm:$0xff]
        %v395 = vld [vmem:[%s300] sm:$0xff]
        %v396 = vld [vmem:[%s300 + $0x8] sm:$0xff]
        %v397 = vld [vmem:[%s300 + $0x10] sm:$0xff]
        %v398 = vld [vmem:[%s300 + $0x18] sm:$0xff]
        %v399 = vld [vmem:[%s300 + $0x20] sm:$0xff]
        %v400 = vld [vmem:[%s300 + $0x28] sm:$0xff]
        %v401 = vld [vmem:[%s300 + $0x30] sm:$0xff]
        %v402 = vld [vmem:[%s300 + $0x38] sm:$0xff]
        %v403 = vld [vmem:[%s300 + $0x40] sm:$0xff]
        %v404 = vld [vmem:[%s300 + $0x48] sm:$0xff]
        %v405 = vld [vmem:[%s300 + $0x50] sm:$0xff]
        %v406 = vld [vmem:[%s300 + $0x58] sm:$0xff]
        %v407 = vld [vmem:[%s300 + $0x60] sm:$0xff]
        %v408 = vld [vmem:[%s300 + $0x68] sm:$0xff]
        %v409 = vld [vmem:[%s300 + $0x70] sm:$0xff]
        %v410 = vld [vmem:[%s300 + $0x78] sm:$0xff]
        %v411 = vunpack.c.l.bf16 %v395
        %v412 = vunpack.c.h.bf16 %v395
        %v413 = vunpack.c.l.bf16 %v396
        %v414 = vunpack.c.h.bf16 %v396
        %v415 = vunpack.c.l.bf16 %v397
        %v416 = vunpack.c.h.bf16 %v397
        %v417 = vunpack.c.l.bf16 %v398
        %v418 = vunpack.c.h.bf16 %v398
        %v419 = vunpack.c.l.bf16 %v399
        %v420 = vunpack.c.h.bf16 %v399
        %v421 = vunpack.c.l.bf16 %v400
        %v422 = vunpack.c.h.bf16 %v400
        %v423 = vunpack.c.l.bf16 %v401
        %v424 = vunpack.c.h.bf16 %v401
        %v425 = vunpack.c.l.bf16 %v402
        %v426 = vunpack.c.h.bf16 %v402
        %v427 = vunpack.c.l.bf16 %v403
        %v428 = vunpack.c.h.bf16 %v403
        %v429 = vunpack.c.l.bf16 %v404
        %v430 = vunpack.c.h.bf16 %v404
        %v431 = vunpack.c.l.bf16 %v405
        %v432 = vunpack.c.h.bf16 %v405
        %v433 = vunpack.c.l.bf16 %v406
        %v434 = vunpack.c.h.bf16 %v406
        %v435 = vunpack.c.l.bf16 %v407
        %v436 = vunpack.c.h.bf16 %v407
        %v437 = vunpack.c.l.bf16 %v408
        %v438 = vunpack.c.h.bf16 %v408
        %v439 = vunpack.c.l.bf16 %v409
        %v440 = vunpack.c.h.bf16 %v409
        %v441 = vunpack.c.l.bf16 %v410
        %v442 = vunpack.c.h.bf16 %v410
        %443 = vmatprep.subr.mxu0 0.0
        %444 = vmatpush1.msra.mxu0 %v346
        %445 = vmatprep.subr.mxu0 0.0
        %446 = vmatpush1.msra.mxu0 %v347
        %447 = vmatprep.subr.mxu0 0.0
        %448 = vmatpush1.msra.mxu0 %v348
        %449 = vmatprep.subr.mxu0 0.0
        %450 = vmatpush1.msra.mxu0 %v349
        %451 = vmatprep.subr.mxu0 0.0
        %452 = vmatpush1.msra.mxu0 %v350
        %453 = vmatprep.subr.mxu0 0.0
        %454 = vmatpush1.msra.mxu0 %v351
        %455 = vmatprep.subr.mxu0 0.0
        %456 = vmatpush1.msra.mxu0 %v352
        %457 = vmatprep.subr.mxu0 0.0
        %458 = vmatpush1.msra.mxu0 %v353
        %459 = vmatprep.subr.mxu0 0.0
        %460 = vmatpush1.msra.mxu0 %v354
        %461 = vmatprep.subr.mxu0 0.0
        %462 = vmatpush1.msra.mxu0 %v355
        %463 = vmatprep.subr.mxu0 0.0
        %464 = vmatpush1.msra.mxu0 %v356
        %465 = vmatprep.subr.mxu0 0.0
        %466 = vmatpush1.msra.mxu0 %v357
        %467 = vmatprep.subr.mxu0 0.0
        %468 = vmatpush1.msra.mxu0 %v358
        %469 = vmatprep.subr.mxu0 0.0
        %470 = vmatpush1.msra.mxu0 %v359
        %471 = vmatprep.subr.mxu0 0.0
        %472 = vmatpush1.msra.mxu0 %v360
        %473 = vmatprep.subr.mxu0 0.0
        %474 = vmatpush1.msra.mxu0 %v361
        %475 = vmatprep.subr.mxu0 0.0
        %476 = vmatpush1.msra.mxu0 %v362
        %477 = vmatprep.subr.mxu0 0.0
        %478 = vmatpush1.msra.mxu0 %v363
        %479 = vmatprep.subr.mxu0 0.0
        %480 = vmatpush1.msra.mxu0 %v364
        %481 = vmatprep.subr.mxu0 0.0
        %482 = vmatpush1.msra.mxu0 %v365
        %483 = vmatprep.subr.mxu0 0.0
        %484 = vmatpush1.msra.mxu0 %v366
        %485 = vmatprep.subr.mxu0 0.0
        %486 = vmatpush1.msra.mxu0 %v367
        %487 = vmatprep.subr.mxu0 0.0
        %488 = vmatpush1.msra.mxu0 %v368
        %489 = vmatprep.subr.mxu0 0.0
        %490 = vmatpush1.msra.mxu0 %v369
        %491 = vmatprep.subr.mxu0 0.0
        %492 = vmatpush1.msra.mxu0 %v370
        %493 = vmatprep.subr.mxu0 0.0
        %494 = vmatpush1.msra.mxu0 %v371
        %495 = vmatprep.subr.mxu0 0.0
        %496 = vmatpush1.msra.mxu0 %v372
        %497 = vmatprep.subr.mxu0 0.0
        %498 = vmatpush1.msra.mxu0 %v373
        %499 = vmatprep.subr.mxu0 0.0
        %500 = vmatpush1.msra.mxu0 %v374
        %501 = vmatprep.subr.mxu0 0.0
        %502 = vmatpush1.msra.mxu0 %v375
        %503 = vmatprep.subr.mxu0 0.0
        %504 = vmatpush1.msra.mxu0 %v376
        %505 = vmatprep.subr.mxu0 0.0
        %506 = vmatpush1.msra.mxu0 %v377
        %507 = vmatprep.mubr.f32.mxu0 %v412
        %508 = vmatmul.mubr.f32.gmra.mrb[0].mxu0 %v411
        %v509 = vpop.f32.mrb[0].mxu0
        %v510 = vadd.f32 0.0, %v509
        %v511 = vpop.f32.mrb[0].mxu0
        %512 = vmatprep.mubr.f32.mxu0 %v414
        %513 = vmatmul.mubr.f32.gmra.mrb[0].mxu0 %v413
        %v514 = vpop.f32.mrb[0].mxu0
        %v515 = vadd.f32 0.0, %v514
        %v516 = vpop.f32.mrb[0].mxu0
        %517 = vmatprep.mubr.f32.mxu0 %v416
        %518 = vmatmul.mubr.f32.gmra.mrb[0].mxu0 %v415
        %v519 = vpop.f32.mrb[0].mxu0
        %v520 = vadd.f32 0.0, %v519
        %v521 = vpop.f32.mrb[0].mxu0
        %522 = vmatprep.mubr.f32.mxu0 %v418
        %523 = vmatmul.mubr.f32.gmra.mrb[0].mxu0 %v417
        %v524 = vpop.f32.mrb[0].mxu0
        %v525 = vadd.f32 0.0, %v524
        %v526 = vpop.f32.mrb[0].mxu0
        %527 = vmatprep.mubr.f32.mxu0 %v420
        %528 = vmatmul.mubr.f32.gmra.mrb[0].mxu0 %v419
        %v529 = vpop.f32.mrb[0].mxu0
        %v530 = vadd.f32 0.0, %v529
        %v531 = vpop.f32.mrb[0].mxu0
        %532 = vmatprep.mubr.f32.mxu0 %v422
        %533 = vmatmul.mubr.f32.gmra.mrb[0].mxu0 %v421
        %v534 = vpop.f32.mrb[0].mxu0
        %v535 = vadd.f32 0.0, %v534
        %v536 = vpop.f32.mrb[0].mxu0
        %537 = vmatprep.mubr.f32.mxu0 %v424
        %538 = vmatmul.mubr.f32.gmra.mrb[0].mxu0 %v423
        %v539 = vpop.f32.mrb[0].mxu0
        %v540 = vadd.f32 0.0, %v539
        %v541 = vpop.f32.mrb[0].mxu0
        %542 = vmatprep.mubr.f32.mxu0 %v426
        %543 = vmatmul.mubr.f32.gmra.mrb[0].mxu0 %v425
        %v544 = vpop.f32.mrb[0].mxu0
        %v545 = vadd.f32 0.0, %v544
        %v546 = vpop.f32.mrb[0].mxu0
        %547 = vmatprep.mubr.f32.mxu0 %v428
        %548 = vmatmul.mubr.f32.gmra.mrb[0].mxu0 %v427
        %v549 = vpop.f32.mrb[0].mxu0
        %v550 = vadd.f32 0.0, %v549
        %v551 = vpop.f32.mrb[0].mxu0
        %552 = vmatprep.mubr.f32.mxu0 %v430
        %553 = vmatmul.mubr.f32.gmra.mrb[0].mxu0 %v429
        %v554 = vpop.f32.mrb[0].mxu0
        %v555 = vadd.f32 0.0, %v554
        %v556 = vpop.f32.mrb[0].mxu0
        %557 = vmatprep.mubr.f32.mxu0 %v432
        %558 = vmatmul.mubr.f32.gmra.mrb[0].mxu0 %v431
        %v559 = vpop.f32.mrb[0].mxu0
        %v560 = vadd.f32 0.0, %v559
        %v561 = vpop.f32.mrb[0].mxu0
        %562 = vmatprep.mubr.f32.mxu0 %v434
        %563 = vmatmul.mubr.f32.gmra.mrb[0].mxu0 %v433
        %v564 = vpop.f32.mrb[0].mxu0
        %v565 = vadd.f32 0.0, %v564
        %v566 = vpop.f32.mrb[0].mxu0
        %567 = vmatprep.mubr.f32.mxu0 %v436
        %568 = vmatmul.mubr.f32.gmra.mrb[0].mxu0 %v435
        %v569 = vpop.f32.mrb[0].mxu0
        %v570 = vadd.f32 0.0, %v569
        %v571 = vpop.f32.mrb[0].mxu0
        %572 = vmatprep.mubr.f32.mxu0 %v438
        %573 = vmatmul.mubr.f32.gmra.mrb[0].mxu0 %v437
        %v574 = vpop.f32.mrb[0].mxu0
        %v575 = vadd.f32 0.0, %v574
        %v576 = vpop.f32.mrb[0].mxu0
        %577 = vmatprep.mubr.f32.mxu0 %v440
        %578 = vmatmul.mubr.f32.gmra.mrb[0].mxu0 %v439
        %v579 = vpop.f32.mrb[0].mxu0
        %v580 = vadd.f32 0.0, %v579
        %v581 = vpop.f32.mrb[0].mxu0
        %582 = vmatprep.mubr.f32.mxu0 %v442
        %583 = vmatmul.mubr.f32.gmra.mrb[0].mxu0 %v441
        %v584 = vpop.f32.mrb[0].mxu0
        %v585 = vadd.f32 0.0, %v584
        %v586 = vpop.f32.mrb[0].mxu0
        %587 = vdwg.mxu0
        %s588 = sld [smem:[#allocation2]]
        %s589 = sadd.f32 %s588, 1.0
        %v590 = vstv %s589
        %v591 = vmul.f32 %v590, %v379
        %v592 = vmul.f32 %v590, %v380
        %v593 = vmul.f32 %v590, %v381
        %v594 = vmul.f32 %v590, %v382
        %v595 = vmul.f32 %v590, %v383
        %v596 = vmul.f32 %v590, %v384
        %v597 = vmul.f32 %v590, %v385
        %v598 = vmul.f32 %v590, %v386
        %v599 = vmul.f32 %v590, %v387
        %v600 = vmul.f32 %v590, %v388
        %v601 = vmul.f32 %v590, %v389
        %v602 = vmul.f32 %v590, %v390
        %v603 = vmul.f32 %v590, %v391
        %v604 = vmul.f32 %v590, %v392
        %v605 = vmul.f32 %v590, %v393
        %v606 = vmul.f32 %v590, %v394
        %v607 = vadd.f32 %v591, %v510
        %v608 = vadd.f32 %v592, %v515
        %v609 = vadd.f32 %v593, %v520
        %v610 = vadd.f32 %v594, %v525
        %v611 = vadd.f32 %v595, %v530
        %v612 = vadd.f32 %v596, %v535
        %v613 = vadd.f32 %v597, %v540
        %v614 = vadd.f32 %v598, %v545
        %v615 = vadd.f32 %v599, %v550
        %v616 = vadd.f32 %v600, %v555
        %v617 = vadd.f32 %v601, %v560
        %v618 = vadd.f32 %v602, %v565
        %v619 = vadd.f32 %v603, %v570
        %v620 = vadd.f32 %v604, %v575
        %v621 = vadd.f32 %v605, %v580
        %v622 = vadd.f32 %v606, %v585
        %v623 = vld [vmem:[#allocation8] sm:$0xff]
        %v624 = vld [vmem:[#allocation8 + $0x8] sm:$0xff]
        %v625 = vld [vmem:[#allocation8 + $0x10] sm:$0xff]
        %v626 = vld [vmem:[#allocation8 + $0x18] sm:$0xff]
        %v627 = vld [vmem:[#allocation8 + $0x20] sm:$0xff]
        %v628 = vld [vmem:[#allocation8 + $0x28] sm:$0xff]
        %v629 = vld [vmem:[#allocation8 + $0x30] sm:$0xff]
        %v630 = vld [vmem:[#allocation8 + $0x38] sm:$0xff]
        %v631 = vld [vmem:[#allocation8 + $0x40] sm:$0xff]
        %v632 = vld [vmem:[#allocation8 + $0x48] sm:$0xff]
        %v633 = vld [vmem:[#allocation8 + $0x50] sm:$0xff]
        %v634 = vld [vmem:[#allocation8 + $0x58] sm:$0xff]
        %v635 = vld [vmem:[#allocation8 + $0x60] sm:$0xff]
        %v636 = vld [vmem:[#allocation8 + $0x68] sm:$0xff]
        %v637 = vld [vmem:[#allocation8 + $0x70] sm:$0xff]
        %v638 = vld [vmem:[#allocation8 + $0x78] sm:$0xff]
        %v639 = vld [vmem:[%s4] sm:$0x1]
        %v641 = vlaneseq
        %v642 = vshrl.u32 %v641, 7
        %v643 = vsub.s32 0, %v642
        %v644 = vrot.slane %v639, %v643
        %646 = vmatprep.subr.mxu0 0.0
        %647 = vmatpush1.msra.mxu0 %v623
        %648 = vmatprep.subr.mxu0 0.0
        %649 = vmatpush1.msra.mxu0 %v624
        %650 = vmatprep.subr.mxu0 0.0
        %651 = vmatpush1.msra.mxu0 %v625
        %652 = vmatprep.subr.mxu0 0.0
        %653 = vmatpush1.msra.mxu0 %v626
        %654 = vmatprep.subr.mxu0 0.0
        %655 = vmatpush1.msra.mxu0 %v627
        %656 = vmatprep.subr.mxu0 0.0
        %657 = vmatpush1.msra.mxu0 %v628
        %658 = vmatprep.subr.mxu0 0.0
        %659 = vmatpush1.msra.mxu0 %v629
        %660 = vmatprep.subr.mxu0 0.0
        %661 = vmatpush1.msra.mxu0 %v630
        %662 = vmatprep.subr.mxu0 0.0
        %663 = vmatpush1.msra.mxu0 %v631
        %664 = vmatprep.subr.mxu0 0.0
        %665 = vmatpush1.msra.mxu0 %v632
        %666 = vmatprep.subr.mxu0 0.0
        %667 = vmatpush1.msra.mxu0 %v633
        %668 = vmatprep.subr.mxu0 0.0
        %669 = vmatpush1.msra.mxu0 %v634
        %670 = vmatprep.subr.mxu0 0.0
        %671 = vmatpush1.msra.mxu0 %v635
        %672 = vmatprep.subr.mxu0 0.0
        %673 = vmatpush1.msra.mxu0 %v636
        %674 = vmatprep.subr.mxu0 0.0
        %675 = vmatpush1.msra.mxu0 %v637
        %676 = vmatprep.subr.mxu0 0.0
        %677 = vmatpush1.msra.mxu0 %v638
        %678 = vmatprep.subr.mxu0 0.0
        %679 = vmatpush1.msra.mxu0 0.0
        %680 = vmatprep.subr.mxu0 0.0
        %681 = vmatpush1.msra.mxu0 0.0
        %682 = vmatprep.subr.mxu0 0.0
        %683 = vmatpush1.msra.mxu0 0.0
        %684 = vmatprep.subr.mxu0 0.0
        %685 = vmatpush1.msra.mxu0 0.0
        %686 = vmatprep.subr.mxu0 0.0
        %687 = vmatpush1.msra.mxu0 0.0
        %688 = vmatprep.subr.mxu0 0.0
        %689 = vmatpush1.msra.mxu0 0.0
        %690 = vmatprep.subr.mxu0 0.0
        %691 = vmatpush1.msra.mxu0 0.0
        %692 = vmatprep.subr.mxu0 0.0
        %693 = vmatpush1.msra.mxu0 0.0
        %694 = vmatprep.subr.mxu0 0.0
        %695 = vmatpush1.msra.mxu0 0.0
        %696 = vmatprep.subr.mxu0 0.0
        %697 = vmatpush1.msra.mxu0 0.0
        %698 = vmatprep.subr.mxu0 0.0
        %699 = vmatpush1.msra.mxu0 0.0
        %700 = vmatprep.subr.mxu0 0.0
        %701 = vmatpush1.msra.mxu0 0.0
        %702 = vmatprep.subr.mxu0 0.0
        %703 = vmatpush1.msra.mxu0 0.0
        %704 = vmatprep.subr.mxu0 0.0
        %705 = vmatpush1.msra.mxu0 0.0
        %706 = vmatprep.subr.mxu0 0.0
        %707 = vmatpush1.msra.mxu0 0.0
        %708 = vmatprep.subr.mxu0 0.0
        %709 = vmatpush1.msra.mxu0 0.0
        %710 = vmatprep.mubr.f32.mxu0 0.0
        %711 = vmatmul.mubr.f32.gmra.mrb[0].mxu0 %v607
        %v712 = vpop.f32.mrb[0].mxu0
        %v713 = vadd.f32 %v644, %v712
        %v714 = vpop.f32.mrb[0].mxu0
        %715 = vmatprep.mubr.f32.mxu0 0.0
        %716 = vmatmul.mubr.f32.gmra.mrb[0].mxu0 %v608
        %v717 = vpop.f32.mrb[0].mxu0
        %v718 = vadd.f32 %v644, %v717
        %v719 = vpop.f32.mrb[0].mxu0
        %720 = vmatprep.mubr.f32.mxu0 0.0
        %721 = vmatmul.mubr.f32.gmra.mrb[0].mxu0 %v609
        %v722 = vpop.f32.mrb[0].mxu0
        %v723 = vadd.f32 %v644, %v722
        %v724 = vpop.f32.mrb[0].mxu0
        %725 = vmatprep.mubr.f32.mxu0 0.0
        %726 = vmatmul.mubr.f32.gmra.mrb[0].mxu0 %v610
        %v727 = vpop.f32.mrb[0].mxu0
        %v728 = vadd.f32 %v644, %v727
        %v729 = vpop.f32.mrb[0].mxu0
        %730 = vmatprep.mubr.f32.mxu0 0.0
        %731 = vmatmul.mubr.f32.gmra.mrb[0].mxu0 %v611
        %v732 = vpop.f32.mrb[0].mxu0
        %v733 = vadd.f32 %v644, %v732
        %v734 = vpop.f32.mrb[0].mxu0
        %735 = vmatprep.mubr.f32.mxu0 0.0
        %736 = vmatmul.mubr.f32.gmra.mrb[0].mxu0 %v612
        %v737 = vpop.f32.mrb[0].mxu0
        %v738 = vadd.f32 %v644, %v737
        %v739 = vpop.f32.mrb[0].mxu0
        %740 = vmatprep.mubr.f32.mxu0 0.0
        %741 = vmatmul.mubr.f32.gmra.mrb[0].mxu0 %v613
        %v742 = vpop.f32.mrb[0].mxu0
        %v743 = vadd.f32 %v644, %v742
        %v744 = vpop.f32.mrb[0].mxu0
        %745 = vmatprep.mubr.f32.mxu0 0.0
        %746 = vmatmul.mubr.f32.gmra.mrb[0].mxu0 %v614
        %v747 = vpop.f32.mrb[0].mxu0
        %v748 = vadd.f32 %v644, %v747
        %v749 = vpop.f32.mrb[0].mxu0
        %750 = vmatprep.mubr.f32.mxu0 0.0
        %751 = vmatmul.mubr.f32.gmra.mrb[0].mxu0 %v615
        %v752 = vpop.f32.mrb[0].mxu0
        %v753 = vadd.f32 %v644, %v752
        %v754 = vpop.f32.mrb[0].mxu0
        %755 = vmatprep.mubr.f32.mxu0 0.0
        %756 = vmatmul.mubr.f32.gmra.mrb[0].mxu0 %v616
        %v757 = vpop.f32.mrb[0].mxu0
        %v758 = vadd.f32 %v644, %v757
        %v759 = vpop.f32.mrb[0].mxu0
        %760 = vmatprep.mubr.f32.mxu0 0.0
        %761 = vmatmul.mubr.f32.gmra.mrb[0].mxu0 %v617
        %v762 = vpop.f32.mrb[0].mxu0
        %v763 = vadd.f32 %v644, %v762
        %v764 = vpop.f32.mrb[0].mxu0
        %765 = vmatprep.mubr.f32.mxu0 0.0
        %766 = vmatmul.mubr.f32.gmra.mrb[0].mxu0 %v618
        %v767 = vpop.f32.mrb[0].mxu0
        %v768 = vadd.f32 %v644, %v767
        %v769 = vpop.f32.mrb[0].mxu0
        %770 = vmatprep.mubr.f32.mxu0 0.0
        %771 = vmatmul.mubr.f32.gmra.mrb[0].mxu0 %v619
        %v772 = vpop.f32.mrb[0].mxu0
        %v773 = vadd.f32 %v644, %v772
        %v774 = vpop.f32.mrb[0].mxu0
        %775 = vmatprep.mubr.f32.mxu0 0.0
        %776 = vmatmul.mubr.f32.gmra.mrb[0].mxu0 %v620
        %v777 = vpop.f32.mrb[0].mxu0
        %v778 = vadd.f32 %v644, %v777
        %v779 = vpop.f32.mrb[0].mxu0
        %780 = vmatprep.mubr.f32.mxu0 0.0
        %781 = vmatmul.mubr.f32.gmra.mrb[0].mxu0 %v621
        %v782 = vpop.f32.mrb[0].mxu0
        %v783 = vadd.f32 %v644, %v782
        %v784 = vpop.f32.mrb[0].mxu0
        %785 = vmatprep.mubr.f32.mxu0 0.0
        %786 = vmatmul.mubr.f32.gmra.mrb[0].mxu0 %v622
        %v787 = vpop.f32.mrb[0].mxu0
        %v788 = vadd.f32 %v644, %v787
        %v789 = vpop.f32.mrb[0].mxu0
        %790 = vdwg.mxu0
        %v791 = vmax.f32 %v713, 0.0
        %v792 = vmax.f32 %v718, 0.0
        %v793 = vmax.f32 %v723, 0.0
        %v794 = vmax.f32 %v728, 0.0
        %v795 = vmax.f32 %v733, 0.0
        %v796 = vmax.f32 %v738, 0.0
        %v797 = vmax.f32 %v743, 0.0
        %v798 = vmax.f32 %v748, 0.0
        %v799 = vmax.f32 %v753, 0.0
        %v800 = vmax.f32 %v758, 0.0
        %v801 = vmax.f32 %v763, 0.0
        %v802 = vmax.f32 %v768, 0.0
        %v803 = vmax.f32 %v773, 0.0
        %v804 = vmax.f32 %v778, 0.0
        %v805 = vmax.f32 %v783, 0.0
        %v806 = vmax.f32 %v788, 0.0
        %v807 = vld [vmem:[#allocation9] sm:$0xff]
        %v808 = vld [vmem:[#allocation9 + $0x8] sm:$0xff]
        %v809 = vld [vmem:[#allocation9 + $0x10] sm:$0xff]
        %v810 = vld [vmem:[#allocation9 + $0x18] sm:$0xff]
        %v811 = vld [vmem:[#allocation9 + $0x20] sm:$0xff]
        %v812 = vld [vmem:[#allocation9 + $0x28] sm:$0xff]
        %v813 = vld [vmem:[#allocation9 + $0x30] sm:$0xff]
        %v814 = vld [vmem:[#allocation9 + $0x38] sm:$0xff]
        %v815 = vld [vmem:[#allocation9 + $0x40] sm:$0xff]
        %v816 = vld [vmem:[#allocation9 + $0x48] sm:$0xff]
        %v817 = vld [vmem:[#allocation9 + $0x50] sm:$0xff]
        %v818 = vld [vmem:[#allocation9 + $0x58] sm:$0xff]
        %v819 = vld [vmem:[#allocation9 + $0x60] sm:$0xff]
        %v820 = vld [vmem:[#allocation9 + $0x68] sm:$0xff]
        %v821 = vld [vmem:[#allocation9 + $0x70] sm:$0xff]
        %v822 = vld [vmem:[#allocation9 + $0x78] sm:$0xff]
        %v823 = vld [vmem:[%s6] sm:$0x1]
        %v825 = vlaneseq
        %v826 = vshrl.u32 %v825, 7
        %v827 = vsub.s32 0, %v826
        %v828 = vrot.slane %v823, %v827
        %830 = vmatprep.subr.mxu0 0.0
        %831 = vmatpush1.msra.mxu0 %v807
        %832 = vmatprep.subr.mxu0 0.0
        %833 = vmatpush1.msra.mxu0 %v808
        %834 = vmatprep.subr.mxu0 0.0
        %835 = vmatpush1.msra.mxu0 %v809
        %836 = vmatprep.subr.mxu0 0.0
        %837 = vmatpush1.msra.mxu0 %v810
        %838 = vmatprep.subr.mxu0 0.0
        %839 = vmatpush1.msra.mxu0 %v811
        %840 = vmatprep.subr.mxu0 0.0
        %841 = vmatpush1.msra.mxu0 %v812
        %842 = vmatprep.subr.mxu0 0.0
        %843 = vmatpush1.msra.mxu0 %v813
        %844 = vmatprep.subr.mxu0 0.0
        %845 = vmatpush1.msra.mxu0 %v814
        %846 = vmatprep.subr.mxu0 0.0
        %847 = vmatpush1.msra.mxu0 %v815
        %848 = vmatprep.subr.mxu0 0.0
        %849 = vmatpush1.msra.mxu0 %v816
        %850 = vmatprep.subr.mxu0 0.0
        %851 = vmatpush1.msra.mxu0 %v817
        %852 = vmatprep.subr.mxu0 0.0
        %853 = vmatpush1.msra.mxu0 %v818
        %854 = vmatprep.subr.mxu0 0.0
        %855 = vmatpush1.msra.mxu0 %v819
        %856 = vmatprep.subr.mxu0 0.0
        %857 = vmatpush1.msra.mxu0 %v820
        %858 = vmatprep.subr.mxu0 0.0
        %859 = vmatpush1.msra.mxu0 %v821
        %860 = vmatprep.subr.mxu0 0.0
        %861 = vmatpush1.msra.mxu0 %v822
        %862 = vmatprep.subr.mxu0 0.0
        %863 = vmatpush1.msra.mxu0 0.0
        %864 = vmatprep.subr.mxu0 0.0
        %865 = vmatpush1.msra.mxu0 0.0
        %866 = vmatprep.subr.mxu0 0.0
        %867 = vmatpush1.msra.mxu0 0.0
        %868 = vmatprep.subr.mxu0 0.0
        %869 = vmatpush1.msra.mxu0 0.0
        %870 = vmatprep.subr.mxu0 0.0
        %871 = vmatpush1.msra.mxu0 0.0
        %872 = vmatprep.subr.mxu0 0.0
        %873 = vmatpush1.msra.mxu0 0.0
        %874 = vmatprep.subr.mxu0 0.0
        %875 = vmatpush1.msra.mxu0 0.0
        %876 = vmatprep.subr.mxu0 0.0
        %877 = vmatpush1.msra.mxu0 0.0
        %878 = vmatprep.subr.mxu0 0.0
        %879 = vmatpush1.msra.mxu0 0.0
        %880 = vmatprep.subr.mxu0 0.0
        %881 = vmatpush1.msra.mxu0 0.0
        %882 = vmatprep.subr.mxu0 0.0
        %883 = vmatpush1.msra.mxu0 0.0
        %884 = vmatprep.subr.mxu0 0.0
        %885 = vmatpush1.msra.mxu0 0.0
        %886 = vmatprep.subr.mxu0 0.0
        %887 = vmatpush1.msra.mxu0 0.0
        %888 = vmatprep.subr.mxu0 0.0
        %889 = vmatpush1.msra.mxu0 0.0
        %890 = vmatprep.subr.mxu0 0.0
        %891 = vmatpush1.msra.mxu0 0.0
        %892 = vmatprep.subr.mxu0 0.0
        %893 = vmatpush1.msra.mxu0 0.0
        %894 = vmatprep.mubr.f32.mxu0 0.0
        %895 = vmatmul.mubr.f32.gmra.mrb[0].mxu0 %v791
        %v896 = vpop.f32.mrb[0].mxu0
        %v897 = vadd.f32 %v828, %v896
        %v898 = vpop.f32.mrb[0].mxu0
        %899 = vmatprep.mubr.f32.mxu0 0.0
        %900 = vmatmul.mubr.f32.gmra.mrb[0].mxu0 %v792
        %v901 = vpop.f32.mrb[0].mxu0
        %v902 = vadd.f32 %v828, %v901
        %v903 = vpop.f32.mrb[0].mxu0
        %904 = vmatprep.mubr.f32.mxu0 0.0
        %905 = vmatmul.mubr.f32.gmra.mrb[0].mxu0 %v793
        %v906 = vpop.f32.mrb[0].mxu0
        %v907 = vadd.f32 %v828, %v906
        %v908 = vpop.f32.mrb[0].mxu0
        %909 = vmatprep.mubr.f32.mxu0 0.0
        %910 = vmatmul.mubr.f32.gmra.mrb[0].mxu0 %v794
        %v911 = vpop.f32.mrb[0].mxu0
        %v912 = vadd.f32 %v828, %v911
        %v913 = vpop.f32.mrb[0].mxu0
        %914 = vmatprep.mubr.f32.mxu0 0.0
        %915 = vmatmul.mubr.f32.gmra.mrb[0].mxu0 %v795
        %v916 = vpop.f32.mrb[0].mxu0
        %v917 = vadd.f32 %v828, %v916
        %v918 = vpop.f32.mrb[0].mxu0
        %919 = vmatprep.mubr.f32.mxu0 0.0
        %920 = vmatmul.mubr.f32.gmra.mrb[0].mxu0 %v796
        %v921 = vpop.f32.mrb[0].mxu0
        %v922 = vadd.f32 %v828, %v921
        %v923 = vpop.f32.mrb[0].mxu0
        %924 = vmatprep.mubr.f32.mxu0 0.0
        %925 = vmatmul.mubr.f32.gmra.mrb[0].mxu0 %v797
        %v926 = vpop.f32.mrb[0].mxu0
        %v927 = vadd.f32 %v828, %v926
        %v928 = vpop.f32.mrb[0].mxu0
        %929 = vmatprep.mubr.f32.mxu0 0.0
        %930 = vmatmul.mubr.f32.gmra.mrb[0].mxu0 %v798
        %v931 = vpop.f32.mrb[0].mxu0
        %v932 = vadd.f32 %v828, %v931
        %v933 = vpop.f32.mrb[0].mxu0
        %934 = vmatprep.mubr.f32.mxu0 0.0
        %935 = vmatmul.mubr.f32.gmra.mrb[0].mxu0 %v799
        %v936 = vpop.f32.mrb[0].mxu0
        %v937 = vadd.f32 %v828, %v936
        %v938 = vpop.f32.mrb[0].mxu0
        %939 = vmatprep.mubr.f32.mxu0 0.0
        %940 = vmatmul.mubr.f32.gmra.mrb[0].mxu0 %v800
        %v941 = vpop.f32.mrb[0].mxu0
        %v942 = vadd.f32 %v828, %v941
        %v943 = vpop.f32.mrb[0].mxu0
        %944 = vmatprep.mubr.f32.mxu0 0.0
        %945 = vmatmul.mubr.f32.gmra.mrb[0].mxu0 %v801
        %v946 = vpop.f32.mrb[0].mxu0
        %v947 = vadd.f32 %v828, %v946
        %v948 = vpop.f32.mrb[0].mxu0
        %949 = vmatprep.mubr.f32.mxu0 0.0
        %950 = vmatmul.mubr.f32.gmra.mrb[0].mxu0 %v802
        %v951 = vpop.f32.mrb[0].mxu0
        %v952 = vadd.f32 %v828, %v951
        %v953 = vpop.f32.mrb[0].mxu0
        %954 = vmatprep.mubr.f32.mxu0 0.0
        %955 = vmatmul.mubr.f32.gmra.mrb[0].mxu0 %v803
        %v956 = vpop.f32.mrb[0].mxu0
        %v957 = vadd.f32 %v828, %v956
        %v958 = vpop.f32.mrb[0].mxu0
        %959 = vmatprep.mubr.f32.mxu0 0.0
        %960 = vmatmul.mubr.f32.gmra.mrb[0].mxu0 %v804
        %v961 = vpop.f32.mrb[0].mxu0
        %v962 = vadd.f32 %v828, %v961
        %v963 = vpop.f32.mrb[0].mxu0
        %964 = vmatprep.mubr.f32.mxu0 0.0
        %965 = vmatmul.mubr.f32.gmra.mrb[0].mxu0 %v805
        %v966 = vpop.f32.mrb[0].mxu0
        %v967 = vadd.f32 %v828, %v966
        %v968 = vpop.f32.mrb[0].mxu0
        %969 = vmatprep.mubr.f32.mxu0 0.0
        %970 = vmatmul.mubr.f32.gmra.mrb[0].mxu0 %v806
        %v971 = vpop.f32.mrb[0].mxu0
        %v972 = vadd.f32 %v828, %v971
        %v973 = vpop.f32.mrb[0].mxu0
        %974 = vdwg.mxu0
        %975 = vst [vmem:[%s342] sm:$0xff] %v897
        %976 = vst [vmem:[%s342 + $0x8] sm:$0xff] %v902
        %977 = vst [vmem:[%s342 + $0x10] sm:$0xff] %v907
        %978 = vst [vmem:[%s342 + $0x18] sm:$0xff] %v912
        %979 = vst [vmem:[%s342 + $0x20] sm:$0xff] %v917
        %980 = vst [vmem:[%s342 + $0x28] sm:$0xff] %v922
        %981 = vst [vmem:[%s342 + $0x30] sm:$0xff] %v927
        %982 = vst [vmem:[%s342 + $0x38] sm:$0xff] %v932
        %983 = vst [vmem:[%s342 + $0x40] sm:$0xff] %v937
        %984 = vst [vmem:[%s342 + $0x48] sm:$0xff] %v942
        %985 = vst [vmem:[%s342 + $0x50] sm:$0xff] %v947
        %986 = vst [vmem:[%s342 + $0x58] sm:$0xff] %v952
        %987 = vst [vmem:[%s342 + $0x60] sm:$0xff] %v957
        %988 = vst [vmem:[%s342 + $0x68] sm:$0xff] %v962
        %989 = vst [vmem:[%s342 + $0x70] sm:$0xff] %v967
        %990 = vst [vmem:[%s342 + $0x78] sm:$0xff] %v972
        %s991 = sand.u32 %s187, 1
        %s992 = scalar_lea.sflag [#allocation5], %s991
        %s993 = sand.u32 %s187, 1
        %s994 = smul.addr %s993, 128
        %s995 = scalar_lea.vmem [#allocation11], %s994
        // Predicated region
        $region65: #{tpu_custom_call.1} parent=47 // pred_check
          %p996 = pneg %p197
        $region66: #{tpu_custom_call.1} parent=47 // pred_check_branch
          %998 = sbr.rel (%p996) target = $region68
        $region67: #{tpu_custom_call.1} parent=47 // pred_region
          %s999 = smul.u32 16, %s27
          %s1001 = ssub.s32 2048, 2048
          %1002 = vsyncadd %s992, %s1001
          %s1003 = smul.addr %s999, 128
          %s1004 = scalar_lea.hbm %s7, %s1003
          %s1005 = sshll.u32 %s995, 4
          %s1006 = int_to_ptr.vmem [resolvable:$true] %s1005
          %1011 = dma.vmem_to_hbm [thread:$0]  %s1006, 2048, %s1004, %s992, 128, 128, 8
        $region68: #{tpu_custom_call.1} parent=47 // pred_fallthru
          _
      $region48: #{tpu_custom_call.1} parent=5 // pred_fallthru
        _
      %p1012 = scmp.le.s32.totalorder 2, %s22
      // Predicated region
      $region69: #{tpu_custom_call.1} parent=5 // pred_check
        %p1013 = pneg %p1012
      $region70: #{tpu_custom_call.1} parent=5 // pred_check_branch
        %1015 = sbr.rel (%p1013) target = $region72
      $region71: #{tpu_custom_call.1} parent=5 // pred_region
        %s1016 = ssub.s32 %s22, 2
        // Predicated region
        $region73: #{tpu_custom_call.1} parent=71 // pred_check
          %p1017 = pneg %p203
        $region74: #{tpu_custom_call.1} parent=71 // pred_check_branch
          %1019 = sbr.rel (%p1017) target = $region76
        $region75: #{tpu_custom_call.1} parent=71 // pred_region
          %s1020 = sand.u32 %s188, 1
          %s1021 = scalar_lea.sflag [#allocation5], %s1020
          %s1022 = sand.u32 %s188, 1
          %s1023 = smul.addr %s1022, 128
          %s1024 = scalar_lea.vmem [#allocation11], %s1023
          %1025 = dma.done %s1021, 2048
        $region76: #{tpu_custom_call.1} parent=71 // pred_fallthru
          _
      $region72: #{tpu_custom_call.1} parent=5 // pred_fallthru
        _
    $region6: #{tpu_custom_call.1} parent=1 // loop_footer
      %s26 = sadd.s32 1, %s22
    $region7: #{tpu_custom_call.1} parent=1 // loop_footer_branch
      %21 = sbr.rel target = $region3
    $region8: #{tpu_custom_call.1} parent=1 // loop_exit
      _
    %1026 = vsyncpa [#allocation4], 1
    %s1027 = scalar_lea.sflag [#allocation4], 1
    %1028 = vsyncpa %s1027, 1
    %1029 = vsyncpa [#allocation7], 1
    %1030 = vsyncpa [#allocation10], 1
    %1031 = vsyncpa [#allocation5], 1
    %s1032 = scalar_lea.sflag [#allocation5], 1
    %1033 = vsyncpa %s1032, 1

</llo_original>
